<compile_context>
chip_gen: v7x
topology: tpu7x:2x2x1
jax: 0.10.0
libtpu: 0.0.40
codegen_flags: <defaults>
</compile_context>

<pallas_src>
import functools

import jax
import jax.numpy as jnp
from jax.experimental import pallas as pl
from jax.experimental.pallas import tpu as pltpu

IMG = 32                              # config.image_size (25 + 3 = 28 outputs)
POOL = 6                              # MaxPool2d(kernel_size=6, stride=6)
NPOOL = (IMG - POOL) // POOL + 1      # 5
NPREFIX = 3
NOUT = NPREFIX + NPOOL * NPOOL        # 28
NPIX = IMG * IMG                      # 1024


def _round_up(x, m):
    return (x + m - 1) // m * m


# --- pltpu.roll convention probe -------------------------------------------
# We need rolled[..., k] == x[..., (k + s) mod n].  With np.roll semantics that
# is shift = n - s; probe once on hardware so a flipped rotate convention
# cannot silently change the convolution direction.
_ROLL_PROBE_CACHE = {}


def _roll_is_np_like() -> bool:
    if "np_like" not in _ROLL_PROBE_CACHE:
        def _probe(x_ref, o_ref):
            o_ref[...] = pltpu.roll(x_ref[...], shift=1, axis=1)

        x = jnp.broadcast_to(jnp.arange(128, dtype=jnp.float32), (8, 128))
        out = pl.pallas_call(
            _probe, out_shape=jax.ShapeDtypeStruct((8, 128), jnp.float32)
        )(x)
        # np.roll semantics: result[:, 0] == x[:, -1] == 127
        _ROLL_PROBE_CACHE["np_like"] = bool(out[0, 0] == 127.0)
    return _ROLL_PROBE_CACHE["np_like"]


def _image_transformer_kernel(x_ref, g_ref, pref_ref, o_ref, *, np_like_roll):
    # x_ref   : (TB, 1024)  flattened 32x32 images, batch on sublanes
    # g_ref   : (1024, 28)  one-hot gather matrix (pooled lane -> output col)
    # pref_ref: (1, 28)     [BOS, TMP, SEP] encodings in cols 0..2, 0 elsewhere
    # o_ref   : (TB, 28)
    tb, n = x_ref.shape
    w = IMG

    def rollp(v, s):
        # rolled[:, k] = v[:, (k + s) mod n]
        return pltpu.roll(v, shift=(n - s) if np_like_roll else s, axis=1)

    lane = jax.lax.broadcasted_iota(jnp.int32, (tb, n), 1)
    col_edge = (lane % w) == (w - 1)       # c == 31: no column c+1
    row_edge = lane >= n - w               # r == 31: no row r+1
    diag_edge = col_edge | row_edge

    def relu(v):
        return jnp.maximum(v, 0.0)

    def shift_c(v):        # v[r, c+1], zero past the right edge
        return jnp.where(col_edge, 0.0, rollp(v, 1))

    def shift_r(v):        # v[r+1, c], zero past the bottom edge
        return jnp.where(row_edge, 0.0, rollp(v, w))

    def shift_rc(v):       # v[r+1, c+1], zero past either edge
        return jnp.where(diag_edge, 0.0, rollp(v, w + 1))

    x = x_ref[...].astype(jnp.float32)
    x1 = relu(shift_c(x) - x)                    # k1 + ReLU
    x2 = relu(shift_r(x1) - x1)                  # k2 + ReLU
    x3 = relu(shift_c(x2) - shift_r(x2))         # k3 + ReLU
    x4 = relu(x3 - shift_rc(x3))                 # k4 + ReLU

    # MaxPool2d(6, 6) as a roll max-tree.  After both trees, lane 32*(6i)+6j of
    # c6 holds the max over the 6x6 window (i, j).  The lanes we read only pull
    # from rows/cols <= 29, so no wrap-around masking is needed.
    m1 = jnp.maximum(x4, rollp(x4, w))           # rows r, r+1
    m2 = jnp.maximum(m1, rollp(m1, 2 * w))       # rows r .. r+3
    m6 = jnp.maximum(m2, rollp(m1, 4 * w))       # rows r .. r+5
    c1 = jnp.maximum(m6, rollp(m6, 1))           # cols c, c+1
    c2 = jnp.maximum(c1, rollp(c1, 2))           # cols c .. c+3
    c6 = jnp.maximum(c2, rollp(c1, 4))           # cols c .. c+5

    # Gather the 25 pooled lanes into output cols 3..27 with a one-hot matmul
    # (the MXU is otherwise idle), add the broadcast prefix row, single store.
    out = jnp.dot(c6, g_ref[...], preferred_element_type=jnp.float32)
    out = out + pref_ref[...].astype(jnp.float32)
    o_ref[...] = out.astype(o_ref.dtype)


def image_transformer_forward(x, prefix, *, block_b=256):
    """x: (B,1,32,32), (B,32,32) or (B,1024); prefix: (3,) encodings -> (B,28)."""
    b = x.shape[0]
    x = x.reshape(b, -1)
    assert x.shape[1] == NPIX, "Image_Transformer expects 32x32 single-channel inputs"
    dtype = x.dtype

    # Batch tile: multiple of 8 sublanes; aim for >= 2 grid steps so the
    # "parallel" axis can shard across both TensorCores on v7x (the extra grid
    # step costs ~0.35us on single-TC chips -- negligible).
    b8 = _round_up(b, 8)
    half = _round_up((b8 + 1) // 2, 8)
    tb = max(8, _round_up(min(block_b, half), 8))
    bp = _round_up(b, tb)
    if bp != b:
        x = jnp.pad(x, ((0, bp - b), (0, 0)))

    # One-hot gather matrix: pooled window (i, j) lives at flat lane
    # 32*(6i) + 6j and goes to output column 3 + 5i + j.
    src_lanes = jnp.array(
        [(POOL * i) * IMG + POOL * j for i in range(NPOOL) for j in range(NPOOL)],
        dtype=jnp.int32)
    g = jnp.zeros((NPIX, NOUT), jnp.float32).at[
        src_lanes, jnp.arange(NPREFIX, NOUT)].set(1.0)
    pref_row = jnp.zeros((1, NOUT), jnp.float32).at[0, :NPREFIX].set(
        prefix.astype(jnp.float32))

    kernel = functools.partial(
        _image_transformer_kernel, np_like_roll=_roll_is_np_like())

    out = pl.pallas_call(
        kernel,
        out_shape=jax.ShapeDtypeStruct((bp, NOUT), dtype),
        grid=(bp // tb,),
        in_specs=[
            pl.BlockSpec((tb, NPIX), lambda i: (i, 0)),      # image tile
            pl.BlockSpec((NPIX, NOUT), lambda i: (0, 0)),    # gather matrix
            pl.BlockSpec((1, NOUT), lambda i: (0, 0)),       # prefix row
        ],
        out_specs=pl.BlockSpec((tb, NOUT), lambda i: (i, 0)),
        compiler_params=pltpu.CompilerParams(
            dimension_semantics=("parallel",),
        ),
    )(x, g, pref_row)
    return out[:b]


def _reference_forward(x, prefix):
    """Pure-JAX reference (PyTorch 'same' padding: zero on the right/bottom)."""
    xi = x[:, 0] if x.ndim == 4 else x                       # (B, 32, 32)
    b = xi.shape[0]

    def shift_c(v):   # v[r, c+1], zero past the right edge
        return jnp.pad(v, ((0, 0), (0, 0), (0, 1)))[:, :, 1:]

    def shift_r(v):   # v[r+1, c], zero past the bottom edge
        return jnp.pad(v, ((0, 0), (0, 1), (0, 0)))[:, 1:, :]

    relu = jax.nn.relu
    y = relu(shift_c(xi) - xi)                                # k1
    y = relu(shift_r(y) - y)                                  # k2
    y = relu(shift_c(y) - shift_r(y))                         # k3
    y = relu(y - shift_r(shift_c(y)))                         # k4

    pooled = y[:, : NPOOL * POOL, : NPOOL * POOL]
    pooled = pooled.reshape(b, NPOOL, POOL, NPOOL, POOL).max(axis=(2, 4))
    flat = pooled.reshape(b, NPOOL * NPOOL)
    pref = jnp.broadcast_to(prefix.astype(flat.dtype)[None, :], (b, NPREFIX))
    return jnp.concatenate([pref, flat], axis=1)


if __name__ == "__main__":
    key = jax.random.PRNGKey(0)
    B = 20
    x = jax.random.normal(key, (B, 1, IMG, IMG), dtype=jnp.float32)
    # Stand-in for config.encoding_map[BOS] / [TMP] / [SEP] (built externally
    # by the RASP-encoding setup in model_run.py).
    prefix = jnp.array([4.0, 5.0, 6.0], dtype=jnp.float32)

    out = image_transformer_forward(x, prefix)   # tb=16 -> 2 batch tiles
    out = jax.block_until_ready(out)

    ref = _reference_forward(x, prefix)
    assert out.shape == (B, NOUT), out.shape
    assert jnp.allclose(out, ref, atol=1e-5, rtol=1e-5), "mismatch vs reference"
    print("KERNEL_OK")
</pallas_src>

<mosaic_0001>
module attributes {stable_mosaic.version = 11 : i64} {
  func.func @_probe(%arg0: memref<8x128xf32, #tpu.memory_space<vmem>>, %arg1: memref<8x128xf32, #tpu.memory_space<vmem>>) attributes {dimension_semantics = [], scalar_prefetch = 0 : i64, scratch_operands = 0 : i64, tpu.core_type = #tpu.core_type<tc>} {
    %c0 = arith.constant 0 : index
    %c0_0 = arith.constant 0 : index
    %0 = vector.load %arg0[%c0, %c0_0] : memref<8x128xf32, #tpu.memory_space<vmem>>, vector<8x128xf32>
    %c1_i32 = arith.constant 1 : i32
    %1 = tpu.dynamic_rotate %0 by %c1_i32 dim 1 : vector<8x128xf32>, i32 -> vector<8x128xf32>
    %c0_1 = arith.constant 0 : index
    %c0_2 = arith.constant 0 : index
    %2 = vector.load %arg1[%c0_1, %c0_2] : memref<8x128xf32, #tpu.memory_space<vmem>>, vector<8x128xf32>
    tpu.vector_store %arg1[%c0_1, %c0_2], %1 {strides = array<i32>} : memref<8x128xf32, #tpu.memory_space<vmem>>, vector<8x128xf32>,
    return
  }
}

</mosaic_0001>

<llo_original>
// kernel: tpu_custom_call.1
$region0: #{tpu_custom_call.1}
  #allocation0 [shape = 'u32[]', space=smem, size = 0x4, offset = 0x4, fixed_abs, tag = 'smem constant byte address 0x4 - core index']
  #allocation1 [shape = 'u32[144,128]{1,0:T(1,128)}', space=vmem, size = 0x12000, scoped, tag = 'internal scratch']
  %s0 = inlined_call_operand.hbm [shape: f32[8,128], index: 0, kind: input, shape index: {}]
  %s1 = inlined_call_operand.hbm [shape: f32[8,128], index: 1, kind: output, shape index: {}]
  %s2 = sld [smem:[#allocation0]]
  $region18: #{tpu_custom_call.1} parent=0
    _
  %s4 = ssub.s32 1, %s2
  %s5 = scalar_select 0, %s4, %s2
  $region1: #{tpu_custom_call.1} parent=0
    #allocation2 [shape = 'u8[4096]{0}', space=vmem, size = 0x1000, scoped, tag = 'input window, operand 0, single buffered']
    #allocation3 [shape = 's32[1]{0}', space=sflag, size = 0x4, scoped, tag = 'scoped memory for tpu_custom_call.1']
    #allocation4 [shape = 's32[1]{0}', space=sflag, size = 0x4, scoped, tag = 'scoped memory for tpu_custom_call.1']
    #allocation5 [shape = 'u8[4096]{0}', space=vmem, size = 0x1000, scoped, tag = 'output window, operand 0, single buffered']
    %6 = vsyncpa [#allocation3], 0
    %7 = vsyncpa [#allocation4], 0
    // Predicated region
    $region2: #{tpu_custom_call.1} parent=1 // pred_check
      _
    $region3: #{tpu_custom_call.1} parent=1 // pred_check_branch
      %9 = sbr.rel (0) target = $region5
    $region4: #{tpu_custom_call.1} parent=1 // pred_region
      %s11 = ssub.s32 128, 128
      %12 = vsyncadd [#allocation3], %s11
      %s14 = sshll.u32 [#allocation2], 4
      %s15 = int_to_ptr.vmem [resolvable:$true] %s14
      %17 = dma.hbm_to_vmem [thread:$0]  %s0, 128, %s15, [#allocation3]
    $region5: #{tpu_custom_call.1} parent=1 // pred_fallthru
      _
    // Predicated region
    $region6: #{tpu_custom_call.1} parent=1 // pred_check
      _
    $region7: #{tpu_custom_call.1} parent=1 // pred_check_branch
      %19 = sbr.rel (0) target = $region9
    $region8: #{tpu_custom_call.1} parent=1 // pred_region
      %20 = dma.done [#allocation3], 128
    $region9: #{tpu_custom_call.1} parent=1 // pred_fallthru
      _
    %v21 = vld [vmem:[#allocation2] sm:$0xff]
    %22 = vrot.lane.b32.xlu0 %v21, 1
    %v23 = vpop.permute.xlu0 %22
    %24 = vst [vmem:[#allocation5] sm:$0xff] %v23
    // Predicated region
    $region10: #{tpu_custom_call.1} parent=1 // pred_check
      _
    $region11: #{tpu_custom_call.1} parent=1 // pred_check_branch
      %26 = sbr.rel (0) target = $region13
    $region12: #{tpu_custom_call.1} parent=1 // pred_region
      %s28 = ssub.s32 128, 128
      %29 = vsyncadd [#allocation4], %s28
      %s31 = sshll.u32 [#allocation5], 4
      %s32 = int_to_ptr.vmem [resolvable:$true] %s31
      %34 = dma.vmem_to_hbm [thread:$0]  %s32, 128, %s1, [#allocation4]
    $region13: #{tpu_custom_call.1} parent=1 // pred_fallthru
      _
    // Predicated region
    $region14: #{tpu_custom_call.1} parent=1 // pred_check
      _
    $region15: #{tpu_custom_call.1} parent=1 // pred_check_branch
      %36 = sbr.rel (0) target = $region17
    $region16: #{tpu_custom_call.1} parent=1 // pred_region
      %37 = dma.done [#allocation4], 128
    $region17: #{tpu_custom_call.1} parent=1 // pred_fallthru
      _
    %38 = vsyncpa [#allocation3], 1
    %39 = vsyncpa [#allocation4], 1

</llo_original>
